<compile_context>
chip_gen: v7x
topology: tpu7x:2x2x1
jax: 0.10.0
libtpu: 0.0.40
codegen_flags: <defaults>
</compile_context>

<pallas_src>
import functools

import jax
import jax.numpy as jnp
from jax.experimental import pallas as pl
from jax.experimental.pallas import tpu as pltpu


def _conv_image(x, w9, ml, mr, mu, md, cout, w_img, hw):
    """3x3 zero-padded conv of one image in transposed layout.

    x  : (Cin, HW) f32, lanes ordered (h, w).
    w9 : (9*Cout, Cin) f32, rows ordered (kh, kw, co).
    ml/mr/mu/md : (Cout, HW) f32 border masks (w!=0, w!=W-1, h!=0, h!=H-1).
    Returns (Cout, HW) f32.
    """
    # One MXU matmul gives all 9 tap partial products at the *unshifted* position.
    p = jnp.dot(w9, x, preferred_element_type=jnp.float32)        # (9*Cout, HW)

    def tap(kh, kw):
        r = (kh * 3 + kw) * cout
        return p[r:r + cout, :]

    # Shift each tap group to the output position it contributes to; the rolled-in
    # wrap values only land on rows/cols that the border masks zero (conv zero pad).
    q = []
    for kh in range(3):
        left = pltpu.roll(tap(kh, 0), 1, axis=1) * ml             # value from w-1
        right = pltpu.roll(tap(kh, 2), hw - 1, axis=1) * mr       # value from w+1
        q.append(tap(kh, 1) + left + right)
    up = pltpu.roll(q[0], w_img, axis=1) * mu                     # value from h-1
    down = pltpu.roll(q[2], hw - w_img, axis=1) * md              # value from h+1
    return q[1] + up + down


def _stats_kernel(w_img, hw, cout, bk, x_ref, w_ref, m_ref, sum_ref, sq_ref):
    """Pass 1: recompute the conv per tile and emit per-tile BN partial sums."""
    w9 = w_ref[...]
    ml = jnp.broadcast_to(m_ref[0:1, :], (cout, hw))
    mr = jnp.broadcast_to(m_ref[1:2, :], (cout, hw))
    mu = jnp.broadcast_to(m_ref[2:3, :], (cout, hw))
    md = jnp.broadcast_to(m_ref[3:4, :], (cout, hw))

    s_acc = jnp.zeros((cout, 1), jnp.float32)
    q_acc = jnp.zeros((cout, 1), jnp.float32)
    for b in range(bk):                                           # bk is small & static
        y = _conv_image(x_ref[b], w9, ml, mr, mu, md, cout, w_img, hw)
        s_acc = s_acc + jnp.sum(y, axis=1, keepdims=True)
        q_acc = q_acc + jnp.sum(y * y, axis=1, keepdims=True)
    sum_ref[...] = s_acc
    sq_ref[...] = q_acc


def _apply_kernel(w_img, hw, cout, bk, x_ref, w_ref, m_ref, shift_ref, alpha_ref, o_ref):
    """Pass 2: conv with BN scale folded into weights, + shift, then PReLU."""
    w9s = w_ref[...]
    ml = jnp.broadcast_to(m_ref[0:1, :], (cout, hw))
    mr = jnp.broadcast_to(m_ref[1:2, :], (cout, hw))
    mu = jnp.broadcast_to(m_ref[2:3, :], (cout, hw))
    md = jnp.broadcast_to(m_ref[3:4, :], (cout, hw))
    shift = shift_ref[...]                                        # (Cout, 1) VMEM
    alpha = alpha_ref[0]                                          # scalar from SMEM

    for b in range(bk):
        y = _conv_image(x_ref[b], w9s, ml, mr, mu, md, cout, w_img, hw)
        z = y + shift
        o_ref[b] = jnp.where(z > 0, z, alpha * z)


def _vmem_limit_bytes():
    try:
        phys = int(pltpu.get_tpu_info().vmem_capacity_bytes)
    except Exception:                                             # pragma: no cover
        phys = 64 * 1024 * 1024                                   # conservative (v7x)
    return max(16 * 1024 * 1024, min(100 * 1024 * 1024, int(phys * 0.6)))


def _pick_bk(n, per_image_bytes, budget_bytes):
    """Images per block: largest divisor of N under the VMEM budget (cap the unroll)."""
    cap = max(1, min(8, budget_bytes // max(per_image_bytes, 1)))
    divs = [d for d in range(1, n + 1) if n % d == 0 and d <= cap]
    multi = [d for d in divs if n // d >= 2]                      # keep >=2 grid steps
    return max(multi) if multi else max(divs)


def upsr_forward(x_nchw, conv_w, bn_gamma, bn_beta, prelu_alpha):
    """x_nchw: (N, Cin, H, W); conv_w: (Cout, Cin, 3, 3)  (PyTorch layouts)."""
    N, Cin, H, W = x_nchw.shape
    Cout = conv_w.shape[0]
    assert conv_w.shape == (Cout, Cin, 3, 3)
    assert Cout % 4 == 0, "PixelShuffle(2) needs Cout divisible by 4"
    HW = H * W
    M = N * HW

    vmem_limit = _vmem_limit_bytes()
    per_img = (Cin + 11 * Cout) * HW * 4                          # rough in-kernel bytes/img
    bk = _pick_bk(N, per_img, vmem_limit // 3)
    T = N // bk
    grid = (T,)

    # ---- zero-cost views / tiny host-side prep ----
    x3 = x_nchw.reshape(N, Cin, HW).astype(jnp.float32)           # free reshape of NCHW
    w9 = jnp.transpose(conv_w, (2, 3, 0, 1)).reshape(9 * Cout, Cin).astype(jnp.float32)

    ww = jnp.arange(HW, dtype=jnp.int32) % W
    hh = jnp.arange(HW, dtype=jnp.int32) // W
    masks = jnp.stack([(ww != 0), (ww != W - 1), (hh != 0), (hh != H - 1)],
                      axis=0).astype(jnp.float32)                 # (4, HW), hoisted masks

    x_spec = pl.BlockSpec((bk, Cin, HW), lambda t: (t, 0, 0))
    w_spec = pl.BlockSpec((9 * Cout, Cin), lambda t: (0, 0))
    m_spec = pl.BlockSpec((4, HW), lambda t: (0, 0))

    # ---- pass 1: stats only (conv recomputed, never written) ----
    sums, sqs = pl.pallas_call(
        functools.partial(_stats_kernel, W, HW, Cout, bk),
        grid=grid,
        in_specs=[x_spec, w_spec, m_spec],
        out_specs=(
            pl.BlockSpec((None, Cout, 1), lambda t: (t, 0, 0)),   # per-tile partials
            pl.BlockSpec((None, Cout, 1), lambda t: (t, 0, 0)),
        ),
        out_shape=(
            jax.ShapeDtypeStruct((T, Cout, 1), jnp.float32),
            jax.ShapeDtypeStruct((T, Cout, 1), jnp.float32),
        ),
        compiler_params=pltpu.CompilerParams(
            dimension_semantics=("parallel",),                    # megacore on v7x
            vmem_limit_bytes=vmem_limit),
    )(x3, w9, masks)

    # ---- tiny per-channel BN coefficients (train mode: biased var over N*H*W) ----
    ch_sum = jnp.sum(sums, axis=0)                                # (Cout, 1)
    ch_sq = jnp.sum(sqs, axis=0)
    mean = ch_sum / M
    var = jnp.maximum(ch_sq / M - mean * mean, 0.0)
    invstd = jax.lax.rsqrt(var + 1e-5)
    scale = bn_gamma.reshape(Cout, 1).astype(jnp.float32) * invstd
    shift = bn_beta.reshape(Cout, 1).astype(jnp.float32) - mean * scale
    w9s = w9 * jnp.tile(scale, (9, 1))                            # fold BN scale into weights
    alpha = jnp.asarray(prelu_alpha, jnp.float32).reshape(1)

    # ---- pass 2: recompute conv (scaled), + shift, PReLU; single lane-dense output ----
    y_pre = pl.pallas_call(
        functools.partial(_apply_kernel, W, HW, Cout, bk),
        grid=grid,
        in_specs=[
            x_spec, w_spec, m_spec,
            pl.BlockSpec((Cout, 1), lambda t: (0, 0)),            # BN shift (resident)
            pl.BlockSpec(memory_space=pltpu.MemorySpace.SMEM),    # PReLU alpha (scalar)
        ],
        out_specs=pl.BlockSpec((bk, Cout, HW), lambda t: (t, 0, 0)),
        out_shape=jax.ShapeDtypeStruct((N, Cout, HW), jnp.float32),
        compiler_params=pltpu.CompilerParams(
            dimension_semantics=("parallel",),
            vmem_limit_bytes=vmem_limit),
    )(x3, w9s, masks, shift, alpha)

    # ---- PixelShuffle(2) + NCHW: pure data movement (shared-slope PReLU commutes) ----
    # TODO(synk): fold this interleave into pass 2 (in-register lane swizzle).
    C = Cout // 4
    y6 = y_pre.reshape(N, C, 2, 2, H, W)                          # (n, c, i, j, h, w)
    out = jnp.transpose(y6, (0, 1, 4, 2, 5, 3)).reshape(N, C, 2 * H, 2 * W)
    return out


def upsr_reference(x_nchw, conv_w, bn_gamma, bn_beta, prelu_alpha):
    """Pure-JAX f32 reference with the same semantics (correctness check)."""
    y = jax.lax.conv_general_dilated(
        x_nchw, conv_w, window_strides=(1, 1), padding=((1, 1), (1, 1)),
        dimension_numbers=('NCHW', 'OIHW', 'NCHW'),
        precision=jax.lax.Precision.HIGHEST)
    mean = jnp.mean(y, axis=(0, 2, 3), keepdims=True)
    var = jnp.mean((y - mean) ** 2, axis=(0, 2, 3), keepdims=True)
    y = (y - mean) * jax.lax.rsqrt(var + 1e-5)
    y = y * bn_gamma.reshape(1, -1, 1, 1) + bn_beta.reshape(1, -1, 1, 1)
    N, C4, H, W = y.shape
    C = C4 // 4
    y = y.reshape(N, C, 2, 2, H, W)
    y = jnp.transpose(y, (0, 1, 4, 2, 5, 3)).reshape(N, C, 2 * H, 2 * W)
    return jnp.where(y > 0, y, prelu_alpha * y)


if __name__ == "__main__":
    key = jax.random.PRNGKey(0)
    k1, k2 = jax.random.split(key)

    # Shapes consistent with UpSR(in_channels=4, out_channels=8, kernel_size=3)
    N, Cin, H, W = 2, 4, 16, 16
    Cout = 8                                     # divisible by 4 for PixelShuffle(2)

    x = jax.random.normal(k1, (N, Cin, H, W), jnp.float32)
    fan_in = Cin * 3 * 3
    conv_w = jax.random.normal(k2, (Cout, Cin, 3, 3), jnp.float32) / jnp.sqrt(fan_in)
    bn_gamma = jnp.ones((Cout,), jnp.float32)    # PyTorch BatchNorm2d default init
    bn_beta = jnp.zeros((Cout,), jnp.float32)
    prelu_alpha = jnp.float32(0.25)              # PyTorch PReLU default (single param)

    out = jax.jit(upsr_forward)(x, conv_w, bn_gamma, bn_beta, prelu_alpha)
    out = jax.block_until_ready(out)

    ref = upsr_reference(x, conv_w, bn_gamma, bn_beta, prelu_alpha)
    assert out.shape == (N, Cout // 4, 2 * H, 2 * W), out.shape
    assert jnp.allclose(out, ref, rtol=2e-2, atol=2e-2), float(jnp.max(jnp.abs(out - ref)))

    print("KERNEL_OK")
</pallas_src>

<mosaic_0001>
module attributes {stable_mosaic.version = 11 : i64} {
  func.func @_stats_kernel(%arg0: i32, %arg1: memref<1x4x256xf32, #tpu.memory_space<vmem>>, %arg2: memref<72x4xf32, #tpu.memory_space<vmem>>, %arg3: memref<4x256xf32, #tpu.memory_space<vmem>>, %arg4: memref<1x8x1xf32, #tpu.memory_space<vmem>>, %arg5: memref<1x8x1xf32, #tpu.memory_space<vmem>>) attributes {dimension_semantics = [#tpu.dimension_semantics<parallel>], iteration_bounds = array<i64: 2>, scalar_prefetch = 0 : i64, scratch_operands = 0 : i64, tpu.core_type = #tpu.core_type<tc>, window_params = [{transform_indices = @transform_0, window_bounds = array<i64: 1, 4, 256>}, {pipeline_mode = #tpu.pipeline_mode<synchronous>, transform_indices = @transform_1, window_bounds = array<i64: 72, 4>}, {pipeline_mode = #tpu.pipeline_mode<synchronous>, transform_indices = @transform_2, window_bounds = array<i64: 4, 256>}, {transform_indices = @transform_3, window_bounds = array<i64: 1, 8, 1>}, {transform_indices = @transform_4, window_bounds = array<i64: 1, 8, 1>}]} {
    %c0 = arith.constant 0 : index
    %c0_0 = arith.constant 0 : index
    %0 = vector.load %arg2[%c0, %c0_0] : memref<72x4xf32, #tpu.memory_space<vmem>>, vector<72x4xf32>
    %c0_1 = arith.constant 0 : index
    %c0_2 = arith.constant 0 : index
    %1 = vector.load %arg3[%c0_1, %c0_2] : memref<4x256xf32, #tpu.memory_space<vmem>>, vector<1x256xf32>
    %2 = vector.shape_cast %1 : vector<1x256xf32> to vector<1x256xf32>
    %3 = vector.broadcast %2 : vector<1x256xf32> to vector<8x256xf32>
    %c1 = arith.constant 1 : index
    %c0_3 = arith.constant 0 : index
    %4 = vector.load %arg3[%c1, %c0_3] : memref<4x256xf32, #tpu.memory_space<vmem>>, vector<1x256xf32>
    %5 = vector.shape_cast %4 : vector<1x256xf32> to vector<1x256xf32>
    %6 = vector.broadcast %5 : vector<1x256xf32> to vector<8x256xf32>
    %c2 = arith.constant 2 : index
    %c0_4 = arith.constant 0 : index
    %7 = vector.load %arg3[%c2, %c0_4] : memref<4x256xf32, #tpu.memory_space<vmem>>, vector<1x256xf32>
    %8 = vector.shape_cast %7 : vector<1x256xf32> to vector<1x256xf32>
    %9 = vector.broadcast %8 : vector<1x256xf32> to vector<8x256xf32>
    %c3 = arith.constant 3 : index
    %c0_5 = arith.constant 0 : index
    %10 = vector.load %arg3[%c3, %c0_5] : memref<4x256xf32, #tpu.memory_space<vmem>>, vector<1x256xf32>
    %11 = vector.shape_cast %10 : vector<1x256xf32> to vector<1x256xf32>
    %12 = vector.broadcast %11 : vector<1x256xf32> to vector<8x256xf32>
    %cst = arith.constant 0.000000e+00 : f32
    %13 = vector.broadcast %cst : f32 to vector<8x1xf32>
    %cst_6 = arith.constant 0.000000e+00 : f32
    %14 = vector.broadcast %cst_6 : f32 to vector<8x1xf32>
    %c0_7 = arith.constant 0 : index
    %c0_8 = arith.constant 0 : index
    %c0_9 = arith.constant 0 : index
    %15 = vector.load %arg1[%c0_7, %c0_8, %c0_9] : memref<1x4x256xf32, #tpu.memory_space<vmem>>, vector<1x4x256xf32>
    %16 = vector.shape_cast %15 : vector<1x4x256xf32> to vector<4x256xf32>
    %cst_10 = arith.constant dense<0.000000e+00> : vector<72x256xf32>
    %17 = tpu.matmul %0, %16, %cst_10 {dimension_numbers = #tpu.dot_dimension_numbers<[1], [0], [0], [1], [0, 0, 1, 1], [], []>} : vector<72x4xf32>, vector<4x256xf32>, vector<72x256xf32> -> vector<72x256xf32>
    %18 = vector.extract_strided_slice %17 {offsets = [0, 0], sizes = [8, 256], strides = [1, 1]} : vector<72x256xf32> to vector<8x256xf32>
    %c1_i32 = arith.constant 1 : i32
    %19 = tpu.dynamic_rotate %18 by %c1_i32 dim 1 : vector<8x256xf32>, i32 -> vector<8x256xf32>
    %20 = arith.mulf %19, %3 : vector<8x256xf32>
    %21 = vector.extract_strided_slice %17 {offsets = [16, 0], sizes = [8, 256], strides = [1, 1]} : vector<72x256xf32> to vector<8x256xf32>
    %c255_i32 = arith.constant 255 : i32
    %22 = tpu.dynamic_rotate %21 by %c255_i32 dim 1 : vector<8x256xf32>, i32 -> vector<8x256xf32>
    %23 = arith.mulf %22, %6 : vector<8x256xf32>
    %24 = vector.extract_strided_slice %17 {offsets = [8, 0], sizes = [8, 256], strides = [1, 1]} : vector<72x256xf32> to vector<8x256xf32>
    %25 = arith.addf %24, %20 : vector<8x256xf32>
    %26 = arith.addf %25, %23 : vector<8x256xf32>
    %27 = vector.extract_strided_slice %17 {offsets = [24, 0], sizes = [8, 256], strides = [1, 1]} : vector<72x256xf32> to vector<8x256xf32>
    %c1_i32_11 = arith.constant 1 : i32
    %28 = tpu.dynamic_rotate %27 by %c1_i32_11 dim 1 : vector<8x256xf32>, i32 -> vector<8x256xf32>
    %29 = arith.mulf %28, %3 : vector<8x256xf32>
    %30 = vector.extract_strided_slice %17 {offsets = [40, 0], sizes = [8, 256], strides = [1, 1]} : vector<72x256xf32> to vector<8x256xf32>
    %c255_i32_12 = arith.constant 255 : i32
    %31 = tpu.dynamic_rotate %30 by %c255_i32_12 dim 1 : vector<8x256xf32>, i32 -> vector<8x256xf32>
    %32 = arith.mulf %31, %6 : vector<8x256xf32>
    %33 = vector.extract_strided_slice %17 {offsets = [32, 0], sizes = [8, 256], strides = [1, 1]} : vector<72x256xf32> to vector<8x256xf32>
    %34 = arith.addf %33, %29 : vector<8x256xf32>
    %35 = arith.addf %34, %32 : vector<8x256xf32>
    %36 = vector.extract_strided_slice %17 {offsets = [48, 0], sizes = [8, 256], strides = [1, 1]} : vector<72x256xf32> to vector<8x256xf32>
    %c1_i32_13 = arith.constant 1 : i32
    %37 = tpu.dynamic_rotate %36 by %c1_i32_13 dim 1 : vector<8x256xf32>, i32 -> vector<8x256xf32>
    %38 = arith.mulf %37, %3 : vector<8x256xf32>
    %39 = vector.extract_strided_slice %17 {offsets = [64, 0], sizes = [8, 256], strides = [1, 1]} : vector<72x256xf32> to vector<8x256xf32>
    %c255_i32_14 = arith.constant 255 : i32
    %40 = tpu.dynamic_rotate %39 by %c255_i32_14 dim 1 : vector<8x256xf32>, i32 -> vector<8x256xf32>
    %41 = arith.mulf %40, %6 : vector<8x256xf32>
    %42 = vector.extract_strided_slice %17 {offsets = [56, 0], sizes = [8, 256], strides = [1, 1]} : vector<72x256xf32> to vector<8x256xf32>
    %43 = arith.addf %42, %38 : vector<8x256xf32>
    %44 = arith.addf %43, %41 : vector<8x256xf32>
    %c16_i32 = arith.constant 16 : i32
    %45 = tpu.dynamic_rotate %26 by %c16_i32 dim 1 : vector<8x256xf32>, i32 -> vector<8x256xf32>
    %46 = arith.mulf %45, %9 : vector<8x256xf32>
    %c240_i32 = arith.constant 240 : i32
    %47 = tpu.dynamic_rotate %44 by %c240_i32 dim 1 : vector<8x256xf32>, i32 -> vector<8x256xf32>
    %48 = arith.mulf %47, %12 : vector<8x256xf32>
    %49 = arith.addf %35, %46 : vector<8x256xf32>
    %50 = arith.addf %49, %48 : vector<8x256xf32>
    %cst_15 = arith.constant dense<0.000000e+00> : vector<8xf32>
    %51 = vector.multi_reduction <add>, %50, %cst_15 [1] : vector<8x256xf32> to vector<8xf32>
    %52 = vector.shape_cast %51 : vector<8xf32> to vector<8x1xf32>
    %53 = arith.addf %13, %52 : vector<8x1xf32>
    %54 = arith.mulf %50, %50 : vector<8x256xf32>
    %cst_16 = arith.constant dense<0.000000e+00> : vector<8xf32>
    %55 = vector.multi_reduction <add>, %54, %cst_16 [1] : vector<8x256xf32> to vector<8xf32>
    %56 = vector.shape_cast %55 : vector<8xf32> to vector<8x1xf32>
    %57 = arith.addf %14, %56 : vector<8x1xf32>
    %c0_17 = arith.constant 0 : index
    %c0_18 = arith.constant 0 : index
    %c0_19 = arith.constant 0 : index
    %58 = vector.load %arg4[%c0_17, %c0_18, %c0_19] : memref<1x8x1xf32, #tpu.memory_space<vmem>>, vector<1x8x1xf32>
    %59 = vector.shape_cast %58 : vector<1x8x1xf32> to vector<8x1xf32>
    %60 = vector.shape_cast %53 : vector<8x1xf32> to vector<1x8x1xf32>
    tpu.vector_store %arg4[%c0_17, %c0_18, %c0_19], %60 {strides = array<i32>} : memref<1x8x1xf32, #tpu.memory_space<vmem>>, vector<1x8x1xf32>,
    %c0_20 = arith.constant 0 : index
    %c0_21 = arith.constant 0 : index
    %c0_22 = arith.constant 0 : index
    %61 = vector.load %arg5[%c0_20, %c0_21, %c0_22] : memref<1x8x1xf32, #tpu.memory_space<vmem>>, vector<1x8x1xf32>
    %62 = vector.shape_cast %61 : vector<1x8x1xf32> to vector<8x1xf32>
    %63 = vector.shape_cast %57 : vector<8x1xf32> to vector<1x8x1xf32>
    tpu.vector_store %arg5[%c0_20, %c0_21, %c0_22], %63 {strides = array<i32>} : memref<1x8x1xf32, #tpu.memory_space<vmem>>, vector<1x8x1xf32>,
    return
  }
  func.func @transform_0(%arg0: i32) -> (i32, i32, i32) {
    %c0_i32 = arith.constant 0 : i32
    %c0_i32_0 = arith.constant 0 : i32
    %c0_i32_1 = arith.constant 0 : i32
    return %arg0, %c0_i32, %c0_i32_0 : i32, i32, i32
  }
  func.func @transform_1(%arg0: i32) -> (i32, i32) {
    %c0_i32 = arith.constant 0 : i32
    %c0_i32_0 = arith.constant 0 : i32
    %c0_i32_1 = arith.constant 0 : i32
    return %c0_i32, %c0_i32_0 : i32, i32
  }
  func.func @transform_2(%arg0: i32) -> (i32, i32) {
    %c0_i32 = arith.constant 0 : i32
    %c0_i32_0 = arith.constant 0 : i32
    %c0_i32_1 = arith.constant 0 : i32
    return %c0_i32, %c0_i32_0 : i32, i32
  }
  func.func @transform_3(%arg0: i32) -> (i32, i32, i32) {
    %c0_i32 = arith.constant 0 : i32
    %c0_i32_0 = arith.constant 0 : i32
    %c0_i32_1 = arith.constant 0 : i32
    return %arg0, %c0_i32, %c0_i32_0 : i32, i32, i32
  }
  func.func @transform_4(%arg0: i32) -> (i32, i32, i32) {
    %c0_i32 = arith.constant 0 : i32
    %c0_i32_0 = arith.constant 0 : i32
    %c0_i32_1 = arith.constant 0 : i32
    return %arg0, %c0_i32, %c0_i32_0 : i32, i32, i32
  }
}

module attributes {stable_mosaic.version = 11 : i64} {
  func.func @_apply_kernel(%arg0: i32, %arg1: memref<1x4x256xf32, #tpu.memory_space<vmem>>, %arg2: memref<72x4xf32, #tpu.memory_space<vmem>>, %arg3: memref<4x256xf32, #tpu.memory_space<vmem>>, %arg4: memref<8x1xf32, #tpu.memory_space<vmem>>, %arg5: memref<1xf32, #tpu.memory_space<smem>>, %arg6: memref<1x8x256xf32, #tpu.memory_space<vmem>>) attributes {dimension_semantics = [#tpu.dimension_semantics<parallel>], iteration_bounds = array<i64: 2>, scalar_prefetch = 0 : i64, scratch_operands = 0 : i64, tpu.core_type = #tpu.core_type<tc>, window_params = [{transform_indices = @transform_0, window_bounds = array<i64: 1, 4, 256>}, {pipeline_mode = #tpu.pipeline_mode<synchronous>, transform_indices = @transform_1, window_bounds = array<i64: 72, 4>}, {pipeline_mode = #tpu.pipeline_mode<synchronous>, transform_indices = @transform_2, window_bounds = array<i64: 4, 256>}, {pipeline_mode = #tpu.pipeline_mode<synchronous>, transform_indices = @transform_3, window_bounds = array<i64: 8, 1>}, {transform_indices = @transform_4, window_bounds = array<i64: 1>}, {transform_indices = @transform_5, window_bounds = array<i64: 1, 8, 256>}]} {
    %c0 = arith.constant 0 : index
    %c0_0 = arith.constant 0 : index
    %0 = vector.load %arg2[%c0, %c0_0] : memref<72x4xf32, #tpu.memory_space<vmem>>, vector<72x4xf32>
    %c0_1 = arith.constant 0 : index
    %c0_2 = arith.constant 0 : index
    %1 = vector.load %arg3[%c0_1, %c0_2] : memref<4x256xf32, #tpu.memory_space<vmem>>, vector<1x256xf32>
    %2 = vector.shape_cast %1 : vector<1x256xf32> to vector<1x256xf32>
    %3 = vector.broadcast %2 : vector<1x256xf32> to vector<8x256xf32>
    %c1 = arith.constant 1 : index
    %c0_3 = arith.constant 0 : index
    %4 = vector.load %arg3[%c1, %c0_3] : memref<4x256xf32, #tpu.memory_space<vmem>>, vector<1x256xf32>
    %5 = vector.shape_cast %4 : vector<1x256xf32> to vector<1x256xf32>
    %6 = vector.broadcast %5 : vector<1x256xf32> to vector<8x256xf32>
    %c2 = arith.constant 2 : index
    %c0_4 = arith.constant 0 : index
    %7 = vector.load %arg3[%c2, %c0_4] : memref<4x256xf32, #tpu.memory_space<vmem>>, vector<1x256xf32>
    %8 = vector.shape_cast %7 : vector<1x256xf32> to vector<1x256xf32>
    %9 = vector.broadcast %8 : vector<1x256xf32> to vector<8x256xf32>
    %c3 = arith.constant 3 : index
    %c0_5 = arith.constant 0 : index
    %10 = vector.load %arg3[%c3, %c0_5] : memref<4x256xf32, #tpu.memory_space<vmem>>, vector<1x256xf32>
    %11 = vector.shape_cast %10 : vector<1x256xf32> to vector<1x256xf32>
    %12 = vector.broadcast %11 : vector<1x256xf32> to vector<8x256xf32>
    %c0_6 = arith.constant 0 : index
    %c0_7 = arith.constant 0 : index
    %13 = vector.load %arg4[%c0_6, %c0_7] : memref<8x1xf32, #tpu.memory_space<vmem>>, vector<8x1xf32>
    %c0_8 = arith.constant 0 : index
    %14 = memref.load %arg5[%c0_8] : memref<1xf32, #tpu.memory_space<smem>>
    %c0_9 = arith.constant 0 : index
    %c0_10 = arith.constant 0 : index
    %c0_11 = arith.constant 0 : index
    %15 = vector.load %arg1[%c0_9, %c0_10, %c0_11] : memref<1x4x256xf32, #tpu.memory_space<vmem>>, vector<1x4x256xf32>
    %16 = vector.shape_cast %15 : vector<1x4x256xf32> to vector<4x256xf32>
    %cst = arith.constant dense<0.000000e+00> : vector<72x256xf32>
    %17 = tpu.matmul %0, %16, %cst {dimension_numbers = #tpu.dot_dimension_numbers<[1], [0], [0], [1], [0, 0, 1, 1], [], []>} : vector<72x4xf32>, vector<4x256xf32>, vector<72x256xf32> -> vector<72x256xf32>
    %18 = vector.extract_strided_slice %17 {offsets = [0, 0], sizes = [8, 256], strides = [1, 1]} : vector<72x256xf32> to vector<8x256xf32>
    %c1_i32 = arith.constant 1 : i32
    %19 = tpu.dynamic_rotate %18 by %c1_i32 dim 1 : vector<8x256xf32>, i32 -> vector<8x256xf32>
    %20 = arith.mulf %19, %3 : vector<8x256xf32>
    %21 = vector.extract_strided_slice %17 {offsets = [16, 0], sizes = [8, 256], strides = [1, 1]} : vector<72x256xf32> to vector<8x256xf32>
    %c255_i32 = arith.constant 255 : i32
    %22 = tpu.dynamic_rotate %21 by %c255_i32 dim 1 : vector<8x256xf32>, i32 -> vector<8x256xf32>
    %23 = arith.mulf %22, %6 : vector<8x256xf32>
    %24 = vector.extract_strided_slice %17 {offsets = [8, 0], sizes = [8, 256], strides = [1, 1]} : vector<72x256xf32> to vector<8x256xf32>
    %25 = arith.addf %24, %20 : vector<8x256xf32>
    %26 = arith.addf %25, %23 : vector<8x256xf32>
    %27 = vector.extract_strided_slice %17 {offsets = [24, 0], sizes = [8, 256], strides = [1, 1]} : vector<72x256xf32> to vector<8x256xf32>
    %c1_i32_12 = arith.constant 1 : i32
    %28 = tpu.dynamic_rotate %27 by %c1_i32_12 dim 1 : vector<8x256xf32>, i32 -> vector<8x256xf32>
    %29 = arith.mulf %28, %3 : vector<8x256xf32>
    %30 = vector.extract_strided_slice %17 {offsets = [40, 0], sizes = [8, 256], strides = [1, 1]} : vector<72x256xf32> to vector<8x256xf32>
    %c255_i32_13 = arith.constant 255 : i32
    %31 = tpu.dynamic_rotate %30 by %c255_i32_13 dim 1 : vector<8x256xf32>, i32 -> vector<8x256xf32>
    %32 = arith.mulf %31, %6 : vector<8x256xf32>
    %33 = vector.extract_strided_slice %17 {offsets = [32, 0], sizes = [8, 256], strides = [1, 1]} : vector<72x256xf32> to vector<8x256xf32>
    %34 = arith.addf %33, %29 : vector<8x256xf32>
    %35 = arith.addf %34, %32 : vector<8x256xf32>
    %36 = vector.extract_strided_slice %17 {offsets = [48, 0], sizes = [8, 256], strides = [1, 1]} : vector<72x256xf32> to vector<8x256xf32>
    %c1_i32_14 = arith.constant 1 : i32
    %37 = tpu.dynamic_rotate %36 by %c1_i32_14 dim 1 : vector<8x256xf32>, i32 -> vector<8x256xf32>
    %38 = arith.mulf %37, %3 : vector<8x256xf32>
    %39 = vector.extract_strided_slice %17 {offsets = [64, 0], sizes = [8, 256], strides = [1, 1]} : vector<72x256xf32> to vector<8x256xf32>
    %c255_i32_15 = arith.constant 255 : i32
    %40 = tpu.dynamic_rotate %39 by %c255_i32_15 dim 1 : vector<8x256xf32>, i32 -> vector<8x256xf32>
    %41 = arith.mulf %40, %6 : vector<8x256xf32>
    %42 = vector.extract_strided_slice %17 {offsets = [56, 0], sizes = [8, 256], strides = [1, 1]} : vector<72x256xf32> to vector<8x256xf32>
    %43 = arith.addf %42, %38 : vector<8x256xf32>
    %44 = arith.addf %43, %41 : vector<8x256xf32>
    %c16_i32 = arith.constant 16 : i32
    %45 = tpu.dynamic_rotate %26 by %c16_i32 dim 1 : vector<8x256xf32>, i32 -> vector<8x256xf32>
    %46 = arith.mulf %45, %9 : vector<8x256xf32>
    %c240_i32 = arith.constant 240 : i32
    %47 = tpu.dynamic_rotate %44 by %c240_i32 dim 1 : vector<8x256xf32>, i32 -> vector<8x256xf32>
    %48 = arith.mulf %47, %12 : vector<8x256xf32>
    %49 = arith.addf %35, %46 : vector<8x256xf32>
    %50 = arith.addf %49, %48 : vector<8x256xf32>
    %51 = vector.broadcast %13 : vector<8x1xf32> to vector<8x256xf32>
    %52 = arith.addf %50, %51 : vector<8x256xf32>
    %cst_16 = arith.constant 0.000000e+00 : f32
    %53 = vector.broadcast %cst_16 : f32 to vector<8x256xf32>
    %54 = arith.cmpf ogt, %52, %53 : vector<8x256xf32>
    %55 = vector.broadcast %14 : f32 to vector<8x256xf32>
    %56 = arith.mulf %55, %52 : vector<8x256xf32>
    %57 = arith.select %54, %52, %56 : vector<8x256xi1>, vector<8x256xf32>
    %c0_17 = arith.constant 0 : index
    %c0_18 = arith.constant 0 : index
    %c0_19 = arith.constant 0 : index
    %58 = vector.load %arg6[%c0_17, %c0_18, %c0_19] : memref<1x8x256xf32, #tpu.memory_space<vmem>>, vector<1x8x256xf32>
    %59 = vector.shape_cast %58 : vector<1x8x256xf32> to vector<8x256xf32>
    %60 = vector.shape_cast %57 : vector<8x256xf32> to vector<1x8x256xf32>
    tpu.vector_store %arg6[%c0_17, %c0_18, %c0_19], %60 {strides = array<i32>} : memref<1x8x256xf32, #tpu.memory_space<vmem>>, vector<1x8x256xf32>,
    return
  }
  func.func @transform_0(%arg0: i32) -> (i32, i32, i32) {
    %c0_i32 = arith.constant 0 : i32
    %c0_i32_0 = arith.constant 0 : i32
    %c0_i32_1 = arith.constant 0 : i32
    return %arg0, %c0_i32, %c0_i32_0 : i32, i32, i32
  }
  func.func @transform_1(%arg0: i32) -> (i32, i32) {
    %c0_i32 = arith.constant 0 : i32
    %c0_i32_0 = arith.constant 0 : i32
    %c0_i32_1 = arith.constant 0 : i32
    return %c0_i32, %c0_i32_0 : i32, i32
  }
  func.func @transform_2(%arg0: i32) -> (i32, i32) {
    %c0_i32 = arith.constant 0 : i32
    %c0_i32_0 = arith.constant 0 : i32
    %c0_i32_1 = arith.constant 0 : i32
    return %c0_i32, %c0_i32_0 : i32, i32
  }
  func.func @transform_3(%arg0: i32) -> (i32, i32) {
    %c0_i32 = arith.constant 0 : i32
    %c0_i32_0 = arith.constant 0 : i32
    %c0_i32_1 = arith.constant 0 : i32
    return %c0_i32, %c0_i32_0 : i32, i32
  }
  func.func @transform_4(%arg0: i32) -> i32 {
    %c0_i32 = arith.constant 0 : i32
    %c0_i32_0 = arith.constant 0 : i32
    return %c0_i32 : i32
  }
  func.func @transform_5(%arg0: i32) -> (i32, i32, i32) {
    %c0_i32 = arith.constant 0 : i32
    %c0_i32_0 = arith.constant 0 : i32
    %c0_i32_1 = arith.constant 0 : i32
    return %arg0, %c0_i32, %c0_i32_0 : i32, i32, i32
  }
}

</mosaic_0001>

<llo_original>
// kernel: upsr_forward.2
$region0: #{upsr_forward.2}
  #allocation0 [shape = 'u32[]', space=smem, size = 0x4, offset = 0x4, fixed_abs, tag = 'smem constant byte address 0x4 - core index']
  #allocation1 [shape = 'u32[144,128]{1,0:T(1,128)}', space=vmem, size = 0x12000, scoped, tag = 'internal scratch']
  %s0 = inlined_call_operand.vmem [shape: f32[2,4,256], index: 0, kind: input, shape index: {}]
  %s1 = inlined_call_operand.vmem [shape: f32[72,4], index: 1, kind: input, shape index: {}]
  %s2 = inlined_call_operand.vmem [shape: f32[4,256], index: 2, kind: input, shape index: {}]
  %s3 = inlined_call_operand.vmem [shape: f32[2,8,1], index: 3, kind: output, shape index: {0}]
  %s4 = inlined_call_operand.vmem [shape: f32[2,8,1], index: 4, kind: output, shape index: {1}]
  %5 = xla_tuple %s3, %s4
  %s6 = sld [smem:[#allocation0]]
  $region53: #{upsr_forward.2} parent=0
    _
  %s8 = ssub.s32 1, %s6
  %s9 = scalar_select 0, %s8, %s6
  loop: start=0, step=1, limit=4
  $region2: #{upsr_forward.2} parent=0 // loop_pre_header
    _
  $region3: #{upsr_forward.2} parent=0 // loop_header
    %s11 = sphi 0, %s15
    %p12 = scmp.ge.s32.totalorder %s11, 4
    %s21 = sphi 0, %s23
    %s24 = sphi 0, %s21
    %s25 = sphi 0, %s24
    %s41 = sphi 0, %s25
    %s45 = sphi 0, %s45
    %s47 = sphi 0, %s45
    %s48 = sphi 0, %s47
    %s62 = sphi 0, %s48
    %s66 = sphi 0, %s66
    %s68 = sphi 0, %s66
    %s69 = sphi 0, %s68
    %s83 = sphi 0, %s69
    %s89 = sphi 0, %s91
    %s92 = sphi 0, %s89
    %s93 = sphi 0, %s92
    %s109 = sphi 0, %s93
    %s115 = sphi 0, %s117
    %s118 = sphi 0, %s115
    %s119 = sphi 0, %s118
    %s135 = sphi 0, %s119
  $region4: #{upsr_forward.2} parent=0 // loop_header_branch
    %14 = sbr.rel (%p12) target = $region8
  $region5: #{upsr_forward.2} parent=0 // loop_body
    %s16 = ssub.s32 %s11, 1
    %s17 = ssub.s32 %s11, 2
    %s18 = sadd.s32 %s11, 1
    %s19 = ssub.s32 %s11, %s18
    %p20 = scmp.eq.s32.totalorder %s19, 0
    %s22 = sadd.s32 %s21, 1
    %s23 = scalar_select %p20, %s21, %s22
    %p26 = pneg %p20
    %p27 = scmp.eq.s32.totalorder %s11, 1
    %p28 = por %p26, %p27
    %p29 = scmp.ne.s32.totalorder %s21, %s24
    %p30 = scmp.eq.s32.totalorder %s11, 0
    %p31 = por %p29, %p30
    %p32 = scmp.ne.s32.totalorder %s21, %s24
    %p33 = scmp.eq.s32.totalorder %s16, 1
    %p34 = por %p32, %p33
    %p35 = scmp.ne.s32.totalorder %s24, %s25
    %p36 = scmp.eq.s32.totalorder %s16, 0
    %p37 = por %p35, %p36
    %p38 = scmp.ne.s32.totalorder %s24, %s25
    %p39 = scmp.eq.s32.totalorder %s17, 1
    %p40 = por %p38, %p39
    %p42 = scmp.ne.s32.totalorder %s25, %s41
    %p43 = scmp.eq.s32.totalorder %s17, 0
    %p44 = por %p42, %p43
    %s46 = sadd.s32 %s45, 1
    %p49 = scmp.eq.s32.totalorder %s11, 1
    %p50 = scmp.ne.s32.totalorder %s45, %s47
    %p51 = scmp.eq.s32.totalorder %s11, 0
    %p52 = por %p50, %p51
    %p53 = scmp.ne.s32.totalorder %s45, %s47
    %p54 = scmp.eq.s32.totalorder %s16, 1
    %p55 = por %p53, %p54
    %p56 = scmp.ne.s32.totalorder %s47, %s48
    %p57 = scmp.eq.s32.totalorder %s16, 0
    %p58 = por %p56, %p57
    %p59 = scmp.ne.s32.totalorder %s47, %s48
    %p60 = scmp.eq.s32.totalorder %s17, 1
    %p61 = por %p59, %p60
    %p63 = scmp.ne.s32.totalorder %s48, %s62
    %p64 = scmp.eq.s32.totalorder %s17, 0
    %p65 = por %p63, %p64
    %s67 = sadd.s32 %s66, 1
    %p70 = scmp.eq.s32.totalorder %s11, 1
    %p71 = scmp.ne.s32.totalorder %s66, %s68
    %p72 = scmp.eq.s32.totalorder %s11, 0
    %p73 = por %p71, %p72
    %p74 = scmp.ne.s32.totalorder %s66, %s68
    %p75 = scmp.eq.s32.totalorder %s16, 1
    %p76 = por %p74, %p75
    %p77 = scmp.ne.s32.totalorder %s68, %s69
    %p78 = scmp.eq.s32.totalorder %s16, 0
    %p79 = por %p77, %p78
    %p80 = scmp.ne.s32.totalorder %s68, %s69
    %p81 = scmp.eq.s32.totalorder %s17, 1
    %p82 = por %p80, %p81
    %p84 = scmp.ne.s32.totalorder %s69, %s83
    %p85 = scmp.eq.s32.totalorder %s17, 0
    %p86 = por %p84, %p85
    %s87 = ssub.s32 %s11, %s18
    %p88 = scmp.eq.s32.totalorder %s87, 0
    %s90 = sadd.s32 %s89, 1
    %s91 = scalar_select %p88, %s89, %s90
    %p94 = pneg %p88
    %p95 = scmp.eq.s32.totalorder %s11, 1
    %p96 = por %p94, %p95
    %p97 = scmp.ne.s32.totalorder %s89, %s92
    %p98 = scmp.eq.s32.totalorder %s11, 0
    %p99 = por %p97, %p98
    %p100 = scmp.ne.s32.totalorder %s89, %s92
    %p101 = scmp.eq.s32.totalorder %s16, 1
    %p102 = por %p100, %p101
    %p103 = scmp.ne.s32.totalorder %s92, %s93
    %p104 = scmp.eq.s32.totalorder %s16, 0
    %p105 = por %p103, %p104
    %p106 = scmp.ne.s32.totalorder %s92, %s93
    %p107 = scmp.eq.s32.totalorder %s17, 1
    %p108 = por %p106, %p107
    %p110 = scmp.ne.s32.totalorder %s93, %s109
    %p111 = scmp.eq.s32.totalorder %s17, 0
    %p112 = por %p110, %p111
    %s113 = ssub.s32 %s11, %s18
    %p114 = scmp.eq.s32.totalorder %s113, 0
    %s116 = sadd.s32 %s115, 1
    %s117 = scalar_select %p114, %s115, %s116
    %p120 = pneg %p114
    %p121 = scmp.eq.s32.totalorder %s11, 1
    %p122 = por %p120, %p121
    %p123 = scmp.ne.s32.totalorder %s115, %s118
    %p124 = scmp.eq.s32.totalorder %s11, 0
    %p125 = por %p123, %p124
    %p126 = scmp.ne.s32.totalorder %s115, %s118
    %p127 = scmp.eq.s32.totalorder %s16, 1
    %p128 = por %p126, %p127
    %p129 = scmp.ne.s32.totalorder %s118, %s119
    %p130 = scmp.eq.s32.totalorder %s16, 0
    %p131 = por %p129, %p130
    %p132 = scmp.ne.s32.totalorder %s118, %s119
    %p133 = scmp.eq.s32.totalorder %s17, 1
    %p134 = por %p132, %p133
    %p136 = scmp.ne.s32.totalorder %s119, %s135
    %p137 = scmp.eq.s32.totalorder %s17, 0
    %p138 = por %p136, %p137
    %p139 = scmp.le.s32.totalorder 1, %s11
    %p140 = scmp.lt.s32.totalorder %s11, 3
    %p141 = pnand %p139, %p140
    %p142 = pneg %p141
    // Predicated region
    $region9: #{upsr_forward.2} parent=5 // pred_check
      _
    $region10: #{upsr_forward.2} parent=5 // pred_check_branch
      %144 = sbr.rel (%p141) target = $region12
    $region11: #{upsr_forward.2} parent=5 // pred_region
      %s145 = ssub.s32 %s11, 1
      // Predicated region
      $region13: #{upsr_forward.2} parent=11 // pred_check
        %p146 = pneg %p58
      $region14: #{upsr_forward.2} parent=11 // pred_check_branch
        %148 = sbr.rel (%p146) target = $region16
      $region15: #{upsr_forward.2} parent=11 // pred_region
        _
      $region16: #{upsr_forward.2} parent=11 // pred_fallthru
        _
      // Predicated region
      $region17: #{upsr_forward.2} parent=11 // pred_check
        %p149 = pneg %p79
      $region18: #{upsr_forward.2} parent=11 // pred_check_branch
        %151 = sbr.rel (%p149) target = $region20
      $region19: #{upsr_forward.2} parent=11 // pred_region
        _
      $region20: #{upsr_forward.2} parent=11 // pred_fallthru
        _
    $region12: #{upsr_forward.2} parent=5 // pred_fallthru
      _
    %p152 = scmp.lt.s32.totalorder %s11, 2
    // Predicated region
    $region21: #{upsr_forward.2} parent=5 // pred_check
      %p153 = pneg %p152
    $region22: #{upsr_forward.2} parent=5 // pred_check_branch
      %155 = sbr.rel (%p153) target = $region24
    $region23: #{upsr_forward.2} parent=5 // pred_region
      // Predicated region
      $region25: #{upsr_forward.2} parent=23 // pred_check
        %p156 = pneg %p31
      $region26: #{upsr_forward.2} parent=23 // pred_check_branch
        %158 = sbr.rel (%p156) target = $region28
      $region27: #{upsr_forward.2} parent=23 // pred_region
        %p159 = scmp.lt.s32.totalorder %s11, 1
        %s160 = scalar_select %p159, %s11, 1
        %s161 = smul.addr %s160, 2
        %s162 = smul.addr %s161, 4
        %s163 = scalar_lea.vmem %s0, %s162
      $region28: #{upsr_forward.2} parent=23 // pred_fallthru
        _
    $region24: #{upsr_forward.2} parent=5 // pred_fallthru
      _
    %p164 = scmp.le.s32.totalorder 1, %s11
    %p165 = scmp.lt.s32.totalorder %s11, 3
    %p166 = pnand %p164, %p165
    %p167 = pneg %p166
    // Predicated region
    $region29: #{upsr_forward.2} parent=5 // pred_check
      _
    $region30: #{upsr_forward.2} parent=5 // pred_check_branch
      %169 = sbr.rel (%p166) target = $region32
    $region31: #{upsr_forward.2} parent=5 // pred_region
      %s170 = ssub.s32 %s11, 1
      %p171 = scmp.lt.s32.totalorder %s16, 1
      %s172 = scalar_select %p171, %s16, 1
      %s173 = smul.addr %s172, 2
      %s174 = smul.addr %s173, 4
      %s175 = scalar_lea.vmem %s0, %s174
      %p176 = pneg %p37
      %p177 = pneg %p34
      %p178 = pneg %p58
      %p179 = pneg %p55
      %p180 = pneg %p79
      %p181 = pneg %p76
      %p182 = pneg %p105
      %p183 = pneg %p102
      %p184 = scmp.lt.s32.totalorder %s16, 1
      %s185 = scalar_select %p184, %s16, 1
      %s186 = smul.addr %s185, 8
      %s187 = scalar_lea.vmem %s3, %s186
      %p188 = pneg %p131
      %p189 = pneg %p128
      %p190 = scmp.lt.s32.totalorder %s16, 1
      %s191 = scalar_select %p190, %s16, 1
      %s192 = smul.addr %s191, 8
      %s193 = scalar_lea.vmem %s4, %s192
      %p194 = scmp.lt.s32.totalorder %s16, 1
      %s195 = scalar_select %p194, %s16, 1
      %s196 = smul.addr %s195, 2
      %s197 = smul.addr %s196, 4
      %s198 = scalar_lea.vmem %s0, %s197
      %p199 = scmp.lt.s32.totalorder %s16, 1
      %s200 = scalar_select %p199, %s16, 1
      %s201 = smul.addr %s200, 8
      %s202 = scalar_lea.vmem %s3, %s201
      %p203 = scmp.lt.s32.totalorder %s16, 1
      %s204 = scalar_select %p203, %s16, 1
      %s205 = smul.addr %s204, 8
      %s206 = scalar_lea.vmem %s4, %s205
      %v207 = vld [vmem:[%s1] sm:$0xff]
      %v208 = vld [vmem:[%s1 + $0x8] sm:$0xff]
      %v209 = vld [vmem:[%s1 + $0x10] sm:$0xff]
      %v210 = vld [vmem:[%s1 + $0x18] sm:$0xff]
      %v211 = vld [vmem:[%s1 + $0x20] sm:$0xff]
      %v212 = vld [vmem:[%s1 + $0x28] sm:$0xff]
      %v213 = vld [vmem:[%s1 + $0x30] sm:$0xff]
      %v214 = vld [vmem:[%s1 + $0x38] sm:$0xff]
      %v215 = vld [vmem:[%s1 + $0x40] sm:$0xff]
      %v216 = vld [vmem:[%s2] ss:$4 sm:$0x3]
      %v218 = vlaneseq
      %v219 = vshrl.u32 %v218, 7
      %v220 = vsub.s32 0, %v219
      %v221 = vrot.slane %v216, %v220
      %v222 = vlaneseq
      %v223 = vshrl.u32 %v222, 7
      %v224 = vsub.s32 1, %v223
      %v225 = vrot.slane %v216, %v224
      %s228 = scalar_lea.vmem %s2, 1
      %v229 = vld [vmem:[%s228] ss:$4 sm:$0x3]
      %v231 = vlaneseq
      %v232 = vshrl.u32 %v231, 7
      %v233 = vsub.s32 0, %v232
      %v234 = vrot.slane %v229, %v233
      %v235 = vlaneseq
      %v236 = vshrl.u32 %v235, 7
      %v237 = vsub.s32 1, %v236
      %v238 = vrot.slane %v229, %v237
      %s241 = scalar_lea.vmem %s2, 2
      %v242 = vld [vmem:[%s241] ss:$4 sm:$0x3]
      %v244 = vlaneseq
      %v245 = vshrl.u32 %v244, 7
      %v246 = vsub.s32 0, %v245
      %v247 = vrot.slane %v242, %v246
      %v248 = vlaneseq
      %v249 = vshrl.u32 %v248, 7
      %v250 = vsub.s32 1, %v249
      %v251 = vrot.slane %v242, %v250
      %s254 = scalar_lea.vmem %s2, 3
      %v255 = vld [vmem:[%s254] ss:$4 sm:$0x3]
      %v257 = vlaneseq
      %v258 = vshrl.u32 %v257, 7
      %v259 = vsub.s32 0, %v258
      %v260 = vrot.slane %v255, %v259
      %v261 = vlaneseq
      %v262 = vshrl.u32 %v261, 7
      %v263 = vsub.s32 1, %v262
      %v264 = vrot.slane %v255, %v263
      %v267 = vld [vmem:[%s198] sm:$0xff]
      %v269 = vcombine.high %v267, %v267
      %vm270 = vcmask 31744
      %v272 = vsel %vm270, %v207, 0
      %v275 = vsel %vm270, %v208, 0
      %v278 = vsel %vm270, %v209, 0
      %v281 = vsel %vm270, %v210, 0
      %v284 = vsel %vm270, %v211, 0
      %v287 = vsel %vm270, %v212, 0
      %v290 = vsel %vm270, %v213, 0
      %v293 = vsel %vm270, %v214, 0
      %v296 = vsel %vm270, %v215, 0
      %vm298 = vcmask 1043456
      %v299 = vsel %vm298, %v267, 0
      %v301 = vsel %vm298, %v269, 0
      %303 = vmatprep.subr.mxu0 %v301
      %304 = vmatpush1.msra.mxu0 %v299
      %305 = vmatprep.subr.mxu0 0.0
      %306 = vmatpush1.msra.mxu0 0.0
      %307 = vmatprep.subr.mxu0 0.0
      %308 = vmatpush1.msra.mxu0 0.0
      %309 = vmatprep.subr.mxu0 0.0
      %310 = vmatpush1.msra.mxu0 0.0
      %311 = vmatprep.subr.mxu0 0.0
      %312 = vmatpush1.msra.mxu0 0.0
      %313 = vmatprep.subr.mxu0 0.0
      %314 = vmatpush1.msra.mxu0 0.0
      %315 = vmatprep.subr.mxu0 0.0
      %316 = vmatpush1.msra.mxu0 0.0
      %317 = vmatprep.subr.mxu0 0.0
      %318 = vmatpush1.msra.mxu0 0.0
      %319 = vmatprep.subr.mxu0 0.0
      %320 = vmatpush1.msra.mxu0 0.0
      %321 = vmatprep.subr.mxu0 0.0
      %322 = vmatpush1.msra.mxu0 0.0
      %323 = vmatprep.subr.mxu0 0.0
      %324 = vmatpush1.msra.mxu0 0.0
      %325 = vmatprep.subr.mxu0 0.0
      %326 = vmatpush1.msra.mxu0 0.0
      %327 = vmatprep.subr.mxu0 0.0
      %328 = vmatpush1.msra.mxu0 0.0
      %329 = vmatprep.subr.mxu0 0.0
      %330 = vmatpush1.msra.mxu0 0.0
      %331 = vmatprep.subr.mxu0 0.0
      %332 = vmatpush1.msra.mxu0 0.0
      %333 = vmatprep.subr.mxu0 0.0
      %334 = vmatpush1.msra.mxu0 0.0
      %335 = vmatprep.subr.mxu0 0.0
      %336 = vmatpush1.msra.mxu0 0.0
      %337 = vmatprep.subr.mxu0 0.0
      %338 = vmatpush1.msra.mxu0 0.0
      %339 = vmatprep.subr.mxu0 0.0
      %340 = vmatpush1.msra.mxu0 0.0
      %341 = vmatprep.subr.mxu0 0.0
      %342 = vmatpush1.msra.mxu0 0.0
      %343 = vmatprep.subr.mxu0 0.0
      %344 = vmatpush1.msra.mxu0 0.0
      %345 = vmatprep.subr.mxu0 0.0
      %346 = vmatpush1.msra.mxu0 0.0
      %347 = vmatprep.subr.mxu0 0.0
      %348 = vmatpush1.msra.mxu0 0.0
      %349 = vmatprep.subr.mxu0 0.0
      %350 = vmatpush1.msra.mxu0 0.0
      %351 = vmatprep.subr.mxu0 0.0
      %352 = vmatpush1.msra.mxu0 0.0
      %353 = vmatprep.subr.mxu0 0.0
      %354 = vmatpush1.msra.mxu0 0.0
      %355 = vmatprep.subr.mxu0 0.0
      %356 = vmatpush1.msra.mxu0 0.0
      %357 = vmatprep.subr.mxu0 0.0
      %358 = vmatpush1.msra.mxu0 0.0
      %359 = vmatprep.subr.mxu0 0.0
      %360 = vmatpush1.msra.mxu0 0.0
      %361 = vmatprep.subr.mxu0 0.0
      %362 = vmatpush1.msra.mxu0 0.0
      %363 = vmatprep.subr.mxu0 0.0
      %364 = vmatpush1.msra.mxu0 0.0
      %365 = vmatprep.subr.mxu0 0.0
      %366 = vmatpush1.msra.mxu0 0.0
      %367 = vmatprep.mubr.f32.mxu0 0.0
      %368 = vmatmul.mubr.f32.gmra.mrb[0].mxu0 %v272
      %v369 = vpop.f32.mrb[0].mxu0
      %v370 = vadd.f32 0.0, %v369
      %v371 = vpop.f32.mrb[0].mxu0
      %v372 = vadd.f32 0.0, %v371
      %373 = vmatprep.mubr.f32.mxu0 0.0
      %374 = vmatmul.mubr.f32.gmra.mrb[0].mxu0 %v275
      %v375 = vpop.f32.mrb[0].mxu0
      %v376 = vadd.f32 0.0, %v375
      %v377 = vpop.f32.mrb[0].mxu0
      %v378 = vadd.f32 0.0, %v377
      %379 = vmatprep.mubr.f32.mxu0 0.0
      %380 = vmatmul.mubr.f32.gmra.mrb[0].mxu0 %v278
      %v381 = vpop.f32.mrb[0].mxu0
      %v382 = vadd.f32 0.0, %v381
      %v383 = vpop.f32.mrb[0].mxu0
      %v384 = vadd.f32 0.0, %v383
      %385 = vmatprep.mubr.f32.mxu0 0.0
      %386 = vmatmul.mubr.f32.gmra.mrb[0].mxu0 %v281
      %v387 = vpop.f32.mrb[0].mxu0
      %v388 = vadd.f32 0.0, %v387
      %v389 = vpop.f32.mrb[0].mxu0
      %v390 = vadd.f32 0.0, %v389
      %391 = vmatprep.mubr.f32.mxu0 0.0
      %392 = vmatmul.mubr.f32.gmra.mrb[0].mxu0 %v284
      %v393 = vpop.f32.mrb[0].mxu0
      %v394 = vadd.f32 0.0, %v393
      %v395 = vpop.f32.mrb[0].mxu0
      %v396 = vadd.f32 0.0, %v395
      %397 = vmatprep.mubr.f32.mxu0 0.0
      %398 = vmatmul.mubr.f32.gmra.mrb[0].mxu0 %v287
      %v399 = vpop.f32.mrb[0].mxu0
      %v400 = vadd.f32 0.0, %v399
      %v401 = vpop.f32.mrb[0].mxu0
      %v402 = vadd.f32 0.0, %v401
      %403 = vmatprep.mubr.f32.mxu0 0.0
      %404 = vmatmul.mubr.f32.gmra.mrb[0].mxu0 %v290
      %v405 = vpop.f32.mrb[0].mxu0
      %v406 = vadd.f32 0.0, %v405
      %v407 = vpop.f32.mrb[0].mxu0
      %v408 = vadd.f32 0.0, %v407
      %409 = vmatprep.mubr.f32.mxu0 0.0
      %410 = vmatmul.mubr.f32.gmra.mrb[0].mxu0 %v293
      %v411 = vpop.f32.mrb[0].mxu0
      %v412 = vadd.f32 0.0, %v411
      %v413 = vpop.f32.mrb[0].mxu0
      %v414 = vadd.f32 0.0, %v413
      %415 = vmatprep.mubr.f32.mxu0 0.0
      %416 = vmatmul.mubr.f32.gmra.mrb[0].mxu0 %v296
      %v417 = vpop.f32.mrb[0].mxu0
      %v418 = vadd.f32 0.0, %v417
      %v419 = vpop.f32.mrb[0].mxu0
      %v420 = vadd.f32 0.0, %v419
      %421 = vdwg.mxu0
      %422 = vrot.lane.b32.xlu0 %v370, 1
      %v423 = vpop.permute.xlu0 %422
      %424 = vrot.lane.b32.xlu0 %v372, 1
      %v425 = vpop.permute.xlu0 %424
      %v426 = vlaneseq
      %v427 = vand.u32 %v426, 127
      %vm428 = vcmp.lt.s32.totalorder %v427, 1
      %v429 = vsel %vm428, %v423, %v425
      %v430 = vsel %vm428, %v425, %v423
      %v431 = vmul.f32 %v430, %v221
      %v432 = vmul.f32 %v429, %v225
      %433 = vrot.lane.b32.xlu0 %v382, 127
      %v434 = vpop.permute.xlu0 %433
      %435 = vrot.lane.b32.xlu0 %v384, 127
      %v436 = vpop.permute.xlu0 %435
      %vm437 = vcmp.lt.s32.totalorder %v427, 127
      %v438 = vsel %vm437, %v434, %v436
      %v439 = vsel %vm437, %v436, %v434
      %v440 = vmul.f32 %v438, %v234
      %v441 = vmul.f32 %v439, %v238
      %v442 = vadd.f32 %v376, %v431
      %v443 = vadd.f32 %v378, %v432
      %v444 = vadd.f32 %v442, %v440
      %v445 = vadd.f32 %v443, %v441
      %446 = vrot.lane.b32.xlu0 %v388, 1
      %v447 = vpop.permute.xlu0 %446
      %448 = vrot.lane.b32.xlu0 %v390, 1
      %v449 = vpop.permute.xlu0 %448
      %v450 = vsel %vm428, %v447, %v449
      %v451 = vsel %vm428, %v449, %v447
      %v452 = vmul.f32 %v451, %v221
      %v453 = vmul.f32 %v450, %v225
      %454 = vrot.lane.b32.xlu0 %v400, 127
      %v455 = vpop.permute.xlu0 %454
      %456 = vrot.lane.b32.xlu0 %v402, 127
      %v457 = vpop.permute.xlu0 %456
      %v458 = vsel %vm437, %v455, %v457
      %v459 = vsel %vm437, %v457, %v455
      %v460 = vmul.f32 %v458, %v234
      %v461 = vmul.f32 %v459, %v238
      %v462 = vadd.f32 %v394, %v452
      %v463 = vadd.f32 %v396, %v453
      %v464 = vadd.f32 %v462, %v460
      %v465 = vadd.f32 %v463, %v461
      %466 = vrot.lane.b32.xlu0 %v406, 1
      %v467 = vpop.permute.xlu0 %466
      %468 = vrot.lane.b32.xlu0 %v408, 1
      %v469 = vpop.permute.xlu0 %468
      %v470 = vsel %vm428, %v467, %v469
      %v471 = vsel %vm428, %v469, %v467
      %v472 = vmul.f32 %v471, %v221
      %v473 = vmul.f32 %v470, %v225
      %474 = vrot.lane.b32.xlu0 %v418, 127
      %v475 = vpop.permute.xlu0 %474
      %476 = vrot.lane.b32.xlu0 %v420, 127
      %v477 = vpop.permute.xlu0 %476
      %v478 = vsel %vm437, %v475, %v477
      %v479 = vsel %vm437, %v477, %v475
      %v480 = vmul.f32 %v478, %v234
      %v481 = vmul.f32 %v479, %v238
      %v482 = vadd.f32 %v412, %v472
      %v483 = vadd.f32 %v414, %v473
      %v484 = vadd.f32 %v482, %v480
      %v485 = vadd.f32 %v483, %v481
      %486 = vrot.lane.b32.xlu0 %v444, 16
      %v487 = vpop.permute.xlu0 %486
      %488 = vrot.lane.b32.xlu0 %v445, 16
      %v489 = vpop.permute.xlu0 %488
      %vm490 = vcmp.lt.s32.totalorder %v427, 16
      %v491 = vsel %vm490, %v487, %v489
      %v492 = vsel %vm490, %v489, %v487
      %v493 = vmul.f32 %v492, %v247
      %v494 = vmul.f32 %v491, %v251
      %495 = vrot.lane.b32.xlu0 %v484, 112
      %v496 = vpop.permute.xlu0 %495
      %497 = vrot.lane.b32.xlu0 %v485, 112
      %v498 = vpop.permute.xlu0 %497
      %vm499 = vcmp.lt.s32.totalorder %v427, 112
      %v500 = vsel %vm499, %v496, %v498
      %v501 = vsel %vm499, %v498, %v496
      %v502 = vmul.f32 %v500, %v260
      %v503 = vmul.f32 %v501, %v264
      %v504 = vadd.f32 %v464, %v493
      %v505 = vadd.f32 %v465, %v494
      %v506 = vadd.f32 %v504, %v502
      %v507 = vadd.f32 %v505, %v503
      %v508 = vadd.f32 %v506, %v507
      %509 = vadd.xlane.f32.xlu0 %v508
      %v510 = vpop.xlane.xlu0 %509
      %v511 = vadd.f32 %v510, 0.0
      %v512 = vmul.f32 %v506, %v506
      %v513 = vmul.f32 %v507, %v507
      %v514 = vadd.f32 %v512, %v513
      %515 = vadd.xlane.f32.xlu0 %v514
      %v516 = vpop.xlane.xlu0 %515
      %v517 = vadd.f32 %v516, 0.0
      %vm518 = vcmask 7168
      %519 = vst.msk [vmem:[%s202] sm:$0xff] %vm518, %v511
      %520 = vst.msk [vmem:[%s206] sm:$0xff] %vm518, %v517
      %p521 = scmp.lt.s32.totalorder %s16, 1
      %s522 = scalar_select %p521, %s16, 1
      %s523 = smul.addr %s522, 8
      %s524 = scalar_lea.vmem %s3, %s523
      %p525 = scmp.lt.s32.totalorder %s16, 1
      %s526 = scalar_select %p525, %s16, 1
      %s527 = smul.addr %s526, 8
      %s528 = scalar_lea.vmem %s4, %s527
      // Predicated region
      $region33: #{upsr_forward.2} parent=31 // pred_check
        %p529 = pneg %p102
      $region34: #{upsr_forward.2} parent=31 // pred_check_branch
        %531 = sbr.rel (%p529) target = $region36
      $region35: #{upsr_forward.2} parent=31 // pred_region
        _
      $region36: #{upsr_forward.2} parent=31 // pred_fallthru
        _
      // Predicated region
      $region37: #{upsr_forward.2} parent=31 // pred_check
        %p532 = pneg %p128
      $region38: #{upsr_forward.2} parent=31 // pred_check_branch
        %534 = sbr.rel (%p532) target = $region40
      $region39: #{upsr_forward.2} parent=31 // pred_region
        _
      $region40: #{upsr_forward.2} parent=31 // pred_fallthru
        _
    $region32: #{upsr_forward.2} parent=5 // pred_fallthru
      _
    %p535 = scmp.le.s32.totalorder 2, %s11
    // Predicated region
    $region41: #{upsr_forward.2} parent=5 // pred_check
      %p536 = pneg %p535
    $region42: #{upsr_forward.2} parent=5 // pred_check_branch
      %538 = sbr.rel (%p536) target = $region44
    $region43: #{upsr_forward.2} parent=5 // pred_region
      %s539 = ssub.s32 %s11, 2
      // Predicated region
      $region45: #{upsr_forward.2} parent=43 // pred_check
        %p540 = pneg %p108
      $region46: #{upsr_forward.2} parent=43 // pred_check_branch
        %542 = sbr.rel (%p540) target = $region48
      $region47: #{upsr_forward.2} parent=43 // pred_region
        %p543 = scmp.lt.s32.totalorder %s17, 1
        %s544 = scalar_select %p543, %s17, 1
        %s545 = smul.addr %s544, 8
        %s546 = scalar_lea.vmem %s3, %s545
      $region48: #{upsr_forward.2} parent=43 // pred_fallthru
        _
      // Predicated region
      $region49: #{upsr_forward.2} parent=43 // pred_check
        %p547 = pneg %p134
      $region50: #{upsr_forward.2} parent=43 // pred_check_branch
        %549 = sbr.rel (%p547) target = $region52
      $region51: #{upsr_forward.2} parent=43 // pred_region
        %p550 = scmp.lt.s32.totalorder %s17, 1
        %s551 = scalar_select %p550, %s17, 1
        %s552 = smul.addr %s551, 8
        %s553 = scalar_lea.vmem %s4, %s552
      $region52: #{upsr_forward.2} parent=43 // pred_fallthru
        _
    $region44: #{upsr_forward.2} parent=5 // pred_fallthru
      _
  $region6: #{upsr_forward.2} parent=0 // loop_footer
    %s15 = sadd.s32 1, %s11
  $region7: #{upsr_forward.2} parent=0 // loop_footer_branch
    %10 = sbr.rel target = $region3
  $region8: #{upsr_forward.2} parent=0 // loop_exit
    _

// kernel: upsr_forward.3
$region0: #{upsr_forward.3}
  #allocation0 [shape = 'u32[]', space=smem, size = 0x4, offset = 0x4, fixed_abs, tag = 'smem constant byte address 0x4 - core index']
  #allocation1 [shape = 'u32[144,128]{1,0:T(1,128)}', space=vmem, size = 0x12000, scoped, tag = 'internal scratch']
  #allocation2 [shape = 'f32[1]{0:T(128)S(6)}', space=smem, size = 0x200, scoped, tag = 'scoped memory for upsr_forward.3']
  %s0 = inlined_call_operand.vmem [shape: f32[2,4,256], index: 0, kind: input, shape index: {}]
  %s1 = inlined_call_operand.vmem [shape: f32[72,4], index: 1, kind: input, shape index: {}]
  %s2 = inlined_call_operand.vmem [shape: f32[4,256], index: 2, kind: input, shape index: {}]
  %s3 = inlined_call_operand.vmem [shape: f32[8,1], index: 3, kind: input, shape index: {}]
  %s4 = inlined_call_operand.<no memory space> [shape: f32[1], index: 4, kind: input, shape index: {}]
  %s5 = inlined_call_operand.vmem [shape: f32[2,8,256], index: 5, kind: output, shape index: {}]
  %s6 = sld [smem:[#allocation0]]
  $region53: #{upsr_forward.3} parent=0
    _
  %s8 = ssub.s32 1, %s6
  %s9 = scalar_select 0, %s8, %s6
  %10 = sst [smem:[#allocation2]] %s4
  loop: start=0, step=1, limit=4
  $region2: #{upsr_forward.3} parent=0 // loop_pre_header
    _
  $region3: #{upsr_forward.3} parent=0 // loop_header
    %s12 = sphi 0, %s16
    %p13 = scmp.ge.s32.totalorder %s12, 4
    %s22 = sphi 0, %s24
    %s25 = sphi 0, %s22
    %s26 = sphi 0, %s25
    %s42 = sphi 0, %s26
    %s46 = sphi 0, %s46
    %s48 = sphi 0, %s46
    %s49 = sphi 0, %s48
    %s63 = sphi 0, %s49
    %s67 = sphi 0, %s67
    %s69 = sphi 0, %s67
    %s70 = sphi 0, %s69
    %s84 = sphi 0, %s70
    %s88 = sphi 0, %s88
    %s90 = sphi 0, %s88
    %s91 = sphi 0, %s90
    %s105 = sphi 0, %s91
    %s109 = sphi 0, %s109
    %s111 = sphi 0, %s109
    %s112 = sphi 0, %s111
    %s126 = sphi 0, %s112
    %s132 = sphi 0, %s134
    %s135 = sphi 0, %s132
    %s136 = sphi 0, %s135
    %s152 = sphi 0, %s136
  $region4: #{upsr_forward.3} parent=0 // loop_header_branch
    %15 = sbr.rel (%p13) target = $region8
  $region5: #{upsr_forward.3} parent=0 // loop_body
    %s17 = ssub.s32 %s12, 1
    %s18 = ssub.s32 %s12, 2
    %s19 = sadd.s32 %s12, 1
    %s20 = ssub.s32 %s12, %s19
    %p21 = scmp.eq.s32.totalorder %s20, 0
    %s23 = sadd.s32 %s22, 1
    %s24 = scalar_select %p21, %s22, %s23
    %p27 = pneg %p21
    %p28 = scmp.eq.s32.totalorder %s12, 1
    %p29 = por %p27, %p28
    %p30 = scmp.ne.s32.totalorder %s22, %s25
    %p31 = scmp.eq.s32.totalorder %s12, 0
    %p32 = por %p30, %p31
    %p33 = scmp.ne.s32.totalorder %s22, %s25
    %p34 = scmp.eq.s32.totalorder %s17, 1
    %p35 = por %p33, %p34
    %p36 = scmp.ne.s32.totalorder %s25, %s26
    %p37 = scmp.eq.s32.totalorder %s17, 0
    %p38 = por %p36, %p37
    %p39 = scmp.ne.s32.totalorder %s25, %s26
    %p40 = scmp.eq.s32.totalorder %s18, 1
    %p41 = por %p39, %p40
    %p43 = scmp.ne.s32.totalorder %s26, %s42
    %p44 = scmp.eq.s32.totalorder %s18, 0
    %p45 = por %p43, %p44
    %s47 = sadd.s32 %s46, 1
    %p50 = scmp.eq.s32.totalorder %s12, 1
    %p51 = scmp.ne.s32.totalorder %s46, %s48
    %p52 = scmp.eq.s32.totalorder %s12, 0
    %p53 = por %p51, %p52
    %p54 = scmp.ne.s32.totalorder %s46, %s48
    %p55 = scmp.eq.s32.totalorder %s17, 1
    %p56 = por %p54, %p55
    %p57 = scmp.ne.s32.totalorder %s48, %s49
    %p58 = scmp.eq.s32.totalorder %s17, 0
    %p59 = por %p57, %p58
    %p60 = scmp.ne.s32.totalorder %s48, %s49
    %p61 = scmp.eq.s32.totalorder %s18, 1
    %p62 = por %p60, %p61
    %p64 = scmp.ne.s32.totalorder %s49, %s63
    %p65 = scmp.eq.s32.totalorder %s18, 0
    %p66 = por %p64, %p65
    %s68 = sadd.s32 %s67, 1
    %p71 = scmp.eq.s32.totalorder %s12, 1
    %p72 = scmp.ne.s32.totalorder %s67, %s69
    %p73 = scmp.eq.s32.totalorder %s12, 0
    %p74 = por %p72, %p73
    %p75 = scmp.ne.s32.totalorder %s67, %s69
    %p76 = scmp.eq.s32.totalorder %s17, 1
    %p77 = por %p75, %p76
    %p78 = scmp.ne.s32.totalorder %s69, %s70
    %p79 = scmp.eq.s32.totalorder %s17, 0
    %p80 = por %p78, %p79
    %p81 = scmp.ne.s32.totalorder %s69, %s70
    %p82 = scmp.eq.s32.totalorder %s18, 1
    %p83 = por %p81, %p82
    %p85 = scmp.ne.s32.totalorder %s70, %s84
    %p86 = scmp.eq.s32.totalorder %s18, 0
    %p87 = por %p85, %p86
    %s89 = sadd.s32 %s88, 1
    %p92 = scmp.eq.s32.totalorder %s12, 1
    %p93 = scmp.ne.s32.totalorder %s88, %s90
    %p94 = scmp.eq.s32.totalorder %s12, 0
    %p95 = por %p93, %p94
    %p96 = scmp.ne.s32.totalorder %s88, %s90
    %p97 = scmp.eq.s32.totalorder %s17, 1
    %p98 = por %p96, %p97
    %p99 = scmp.ne.s32.totalorder %s90, %s91
    %p100 = scmp.eq.s32.totalorder %s17, 0
    %p101 = por %p99, %p100
    %p102 = scmp.ne.s32.totalorder %s90, %s91
    %p103 = scmp.eq.s32.totalorder %s18, 1
    %p104 = por %p102, %p103
    %p106 = scmp.ne.s32.totalorder %s91, %s105
    %p107 = scmp.eq.s32.totalorder %s18, 0
    %p108 = por %p106, %p107
    %s110 = sadd.s32 %s109, 1
    %p113 = scmp.eq.s32.totalorder %s12, 1
    %p114 = scmp.ne.s32.totalorder %s109, %s111
    %p115 = scmp.eq.s32.totalorder %s12, 0
    %p116 = por %p114, %p115
    %p117 = scmp.ne.s32.totalorder %s109, %s111
    %p118 = scmp.eq.s32.totalorder %s17, 1
    %p119 = por %p117, %p118
    %p120 = scmp.ne.s32.totalorder %s111, %s112
    %p121 = scmp.eq.s32.totalorder %s17, 0
    %p122 = por %p120, %p121
    %p123 = scmp.ne.s32.totalorder %s111, %s112
    %p124 = scmp.eq.s32.totalorder %s18, 1
    %p125 = por %p123, %p124
    %p127 = scmp.ne.s32.totalorder %s112, %s126
    %p128 = scmp.eq.s32.totalorder %s18, 0
    %p129 = por %p127, %p128
    %s130 = ssub.s32 %s12, %s19
    %p131 = scmp.eq.s32.totalorder %s130, 0
    %s133 = sadd.s32 %s132, 1
    %s134 = scalar_select %p131, %s132, %s133
    %p137 = pneg %p131
    %p138 = scmp.eq.s32.totalorder %s12, 1
    %p139 = por %p137, %p138
    %p140 = scmp.ne.s32.totalorder %s132, %s135
    %p141 = scmp.eq.s32.totalorder %s12, 0
    %p142 = por %p140, %p141
    %p143 = scmp.ne.s32.totalorder %s132, %s135
    %p144 = scmp.eq.s32.totalorder %s17, 1
    %p145 = por %p143, %p144
    %p146 = scmp.ne.s32.totalorder %s135, %s136
    %p147 = scmp.eq.s32.totalorder %s17, 0
    %p148 = por %p146, %p147
    %p149 = scmp.ne.s32.totalorder %s135, %s136
    %p150 = scmp.eq.s32.totalorder %s18, 1
    %p151 = por %p149, %p150
    %p153 = scmp.ne.s32.totalorder %s136, %s152
    %p154 = scmp.eq.s32.totalorder %s18, 0
    %p155 = por %p153, %p154
    %p156 = scmp.le.s32.totalorder 1, %s12
    %p157 = scmp.lt.s32.totalorder %s12, 3
    %p158 = pnand %p156, %p157
    %p159 = pneg %p158
    // Predicated region
    $region9: #{upsr_forward.3} parent=5 // pred_check
      _
    $region10: #{upsr_forward.3} parent=5 // pred_check_branch
      %161 = sbr.rel (%p158) target = $region12
    $region11: #{upsr_forward.3} parent=5 // pred_region
      %s162 = ssub.s32 %s12, 1
      // Predicated region
      $region13: #{upsr_forward.3} parent=11 // pred_check
        %p163 = pneg %p59
      $region14: #{upsr_forward.3} parent=11 // pred_check_branch
        %165 = sbr.rel (%p163) target = $region16
      $region15: #{upsr_forward.3} parent=11 // pred_region
        _
      $region16: #{upsr_forward.3} parent=11 // pred_fallthru
        _
      // Predicated region
      $region17: #{upsr_forward.3} parent=11 // pred_check
        %p166 = pneg %p80
      $region18: #{upsr_forward.3} parent=11 // pred_check_branch
        %168 = sbr.rel (%p166) target = $region20
      $region19: #{upsr_forward.3} parent=11 // pred_region
        _
      $region20: #{upsr_forward.3} parent=11 // pred_fallthru
        _
      // Predicated region
      $region21: #{upsr_forward.3} parent=11 // pred_check
        %p169 = pneg %p101
      $region22: #{upsr_forward.3} parent=11 // pred_check_branch
        %171 = sbr.rel (%p169) target = $region24
      $region23: #{upsr_forward.3} parent=11 // pred_region
        _
      $region24: #{upsr_forward.3} parent=11 // pred_fallthru
        _
      // Predicated region
      $region25: #{upsr_forward.3} parent=11 // pred_check
        %p172 = pneg %p122
      $region26: #{upsr_forward.3} parent=11 // pred_check_branch
        %174 = sbr.rel (%p172) target = $region28
      $region27: #{upsr_forward.3} parent=11 // pred_region
        _
      $region28: #{upsr_forward.3} parent=11 // pred_fallthru
        _
    $region12: #{upsr_forward.3} parent=5 // pred_fallthru
      _
    %p175 = scmp.lt.s32.totalorder %s12, 2
    // Predicated region
    $region29: #{upsr_forward.3} parent=5 // pred_check
      %p176 = pneg %p175
    $region30: #{upsr_forward.3} parent=5 // pred_check_branch
      %178 = sbr.rel (%p176) target = $region32
    $region31: #{upsr_forward.3} parent=5 // pred_region
      // Predicated region
      $region33: #{upsr_forward.3} parent=31 // pred_check
        %p179 = pneg %p32
      $region34: #{upsr_forward.3} parent=31 // pred_check_branch
        %181 = sbr.rel (%p179) target = $region36
      $region35: #{upsr_forward.3} parent=31 // pred_region
        %p182 = scmp.lt.s32.totalorder %s12, 1
        %s183 = scalar_select %p182, %s12, 1
        %s184 = smul.addr %s183, 2
        %s185 = smul.addr %s184, 4
        %s186 = scalar_lea.vmem %s0, %s185
      $region36: #{upsr_forward.3} parent=31 // pred_fallthru
        _
    $region32: #{upsr_forward.3} parent=5 // pred_fallthru
      _
    %p187 = scmp.le.s32.totalorder 1, %s12
    %p188 = scmp.lt.s32.totalorder %s12, 3
    %p189 = pnand %p187, %p188
    %p190 = pneg %p189
    // Predicated region
    $region37: #{upsr_forward.3} parent=5 // pred_check
      _
    $region38: #{upsr_forward.3} parent=5 // pred_check_branch
      %192 = sbr.rel (%p189) target = $region40
    $region39: #{upsr_forward.3} parent=5 // pred_region
      %s193 = ssub.s32 %s12, 1
      %p194 = scmp.lt.s32.totalorder %s17, 1
      %s195 = scalar_select %p194, %s17, 1
      %s196 = smul.addr %s195, 2
      %s197 = smul.addr %s196, 4
      %s198 = scalar_lea.vmem %s0, %s197
      %p199 = pneg %p38
      %p200 = pneg %p35
      %p201 = pneg %p59
      %p202 = pneg %p56
      %p203 = pneg %p80
      %p204 = pneg %p77
      %p205 = pneg %p101
      %p206 = pneg %p98
      %p207 = pneg %p122
      %p208 = pneg %p119
      %p209 = pneg %p148
      %p210 = pneg %p145
      %p211 = scmp.lt.s32.totalorder %s17, 1
      %s212 = scalar_select %p211, %s17, 1
      %s213 = smul.addr %s212, 2
      %s214 = smul.addr %s213, 8
      %s215 = scalar_lea.vmem %s5, %s214
      %p216 = scmp.lt.s32.totalorder %s17, 1
      %s217 = scalar_select %p216, %s17, 1
      %s218 = smul.addr %s217, 2
      %s219 = smul.addr %s218, 4
      %s220 = scalar_lea.vmem %s0, %s219
      %p221 = scmp.lt.s32.totalorder %s17, 1
      %s222 = scalar_select %p221, %s17, 1
      %s223 = smul.addr %s222, 2
      %s224 = smul.addr %s223, 8
      %s225 = scalar_lea.vmem %s5, %s224
      %v226 = vld [vmem:[%s1] sm:$0xff]
      %v227 = vld [vmem:[%s1 + $0x8] sm:$0xff]
      %v228 = vld [vmem:[%s1 + $0x10] sm:$0xff]
      %v229 = vld [vmem:[%s1 + $0x18] sm:$0xff]
      %v230 = vld [vmem:[%s1 + $0x20] sm:$0xff]
      %v231 = vld [vmem:[%s1 + $0x28] sm:$0xff]
      %v232 = vld [vmem:[%s1 + $0x30] sm:$0xff]
      %v233 = vld [vmem:[%s1 + $0x38] sm:$0xff]
      %v234 = vld [vmem:[%s1 + $0x40] sm:$0xff]
      %v235 = vld [vmem:[%s2] ss:$4 sm:$0x3]
      %v237 = vlaneseq
      %v238 = vshrl.u32 %v237, 7
      %v239 = vsub.s32 0, %v238
      %v240 = vrot.slane %v235, %v239
      %v241 = vlaneseq
      %v242 = vshrl.u32 %v241, 7
      %v243 = vsub.s32 1, %v242
      %v244 = vrot.slane %v235, %v243
      %s247 = scalar_lea.vmem %s2, 1
      %v248 = vld [vmem:[%s247] ss:$4 sm:$0x3]
      %v250 = vlaneseq
      %v251 = vshrl.u32 %v250, 7
      %v252 = vsub.s32 0, %v251
      %v253 = vrot.slane %v248, %v252
      %v254 = vlaneseq
      %v255 = vshrl.u32 %v254, 7
      %v256 = vsub.s32 1, %v255
      %v257 = vrot.slane %v248, %v256
      %s260 = scalar_lea.vmem %s2, 2
      %v261 = vld [vmem:[%s260] ss:$4 sm:$0x3]
      %v263 = vlaneseq
      %v264 = vshrl.u32 %v263, 7
      %v265 = vsub.s32 0, %v264
      %v266 = vrot.slane %v261, %v265
      %v267 = vlaneseq
      %v268 = vshrl.u32 %v267, 7
      %v269 = vsub.s32 1, %v268
      %v270 = vrot.slane %v261, %v269
      %s273 = scalar_lea.vmem %s2, 3
      %v274 = vld [vmem:[%s273] ss:$4 sm:$0x3]
      %v276 = vlaneseq
      %v277 = vshrl.u32 %v276, 7
      %v278 = vsub.s32 0, %v277
      %v279 = vrot.slane %v274, %v278
      %v280 = vlaneseq
      %v281 = vshrl.u32 %v280, 7
      %v282 = vsub.s32 1, %v281
      %v283 = vrot.slane %v274, %v282
      %v286 = vld [vmem:[%s3] sm:$0xff]
      %s287 = sld [smem:[#allocation2]]
      %v288 = vld [vmem:[%s220] sm:$0xff]
      %v290 = vcombine.high %v288, %v288
      %vm291 = vcmask 31744
      %v293 = vsel %vm291, %v226, 0
      %v296 = vsel %vm291, %v227, 0
      %v299 = vsel %vm291, %v228, 0
      %v302 = vsel %vm291, %v229, 0
      %v305 = vsel %vm291, %v230, 0
      %v308 = vsel %vm291, %v231, 0
      %v311 = vsel %vm291, %v232, 0
      %v314 = vsel %vm291, %v233, 0
      %v317 = vsel %vm291, %v234, 0
      %vm319 = vcmask 1043456
      %v320 = vsel %vm319, %v288, 0
      %v322 = vsel %vm319, %v290, 0
      %324 = vmatprep.subr.mxu0 %v322
      %325 = vmatpush1.msra.mxu0 %v320
      %326 = vmatprep.subr.mxu0 0.0
      %327 = vmatpush1.msra.mxu0 0.0
      %328 = vmatprep.subr.mxu0 0.0
      %329 = vmatpush1.msra.mxu0 0.0
      %330 = vmatprep.subr.mxu0 0.0
      %331 = vmatpush1.msra.mxu0 0.0
      %332 = vmatprep.subr.mxu0 0.0
      %333 = vmatpush1.msra.mxu0 0.0
      %334 = vmatprep.subr.mxu0 0.0
      %335 = vmatpush1.msra.mxu0 0.0
      %336 = vmatprep.subr.mxu0 0.0
      %337 = vmatpush1.msra.mxu0 0.0
      %338 = vmatprep.subr.mxu0 0.0
      %339 = vmatpush1.msra.mxu0 0.0
      %340 = vmatprep.subr.mxu0 0.0
      %341 = vmatpush1.msra.mxu0 0.0
      %342 = vmatprep.subr.mxu0 0.0
      %343 = vmatpush1.msra.mxu0 0.0
      %344 = vmatprep.subr.mxu0 0.0
      %345 = vmatpush1.msra.mxu0 0.0
      %346 = vmatprep.subr.mxu0 0.0
      %347 = vmatpush1.msra.mxu0 0.0
      %348 = vmatprep.subr.mxu0 0.0
      %349 = vmatpush1.msra.mxu0 0.0
      %350 = vmatprep.subr.mxu0 0.0
      %351 = vmatpush1.msra.mxu0 0.0
      %352 = vmatprep.subr.mxu0 0.0
      %353 = vmatpush1.msra.mxu0 0.0
      %354 = vmatprep.subr.mxu0 0.0
      %355 = vmatpush1.msra.mxu0 0.0
      %356 = vmatprep.subr.mxu0 0.0
      %357 = vmatpush1.msra.mxu0 0.0
      %358 = vmatprep.subr.mxu0 0.0
      %359 = vmatpush1.msra.mxu0 0.0
      %360 = vmatprep.subr.mxu0 0.0
      %361 = vmatpush1.msra.mxu0 0.0
      %362 = vmatprep.subr.mxu0 0.0
      %363 = vmatpush1.msra.mxu0 0.0
      %364 = vmatprep.subr.mxu0 0.0
      %365 = vmatpush1.msra.mxu0 0.0
      %366 = vmatprep.subr.mxu0 0.0
      %367 = vmatpush1.msra.mxu0 0.0
      %368 = vmatprep.subr.mxu0 0.0
      %369 = vmatpush1.msra.mxu0 0.0
      %370 = vmatprep.subr.mxu0 0.0
      %371 = vmatpush1.msra.mxu0 0.0
      %372 = vmatprep.subr.mxu0 0.0
      %373 = vmatpush1.msra.mxu0 0.0
      %374 = vmatprep.subr.mxu0 0.0
      %375 = vmatpush1.msra.mxu0 0.0
      %376 = vmatprep.subr.mxu0 0.0
      %377 = vmatpush1.msra.mxu0 0.0
      %378 = vmatprep.subr.mxu0 0.0
      %379 = vmatpush1.msra.mxu0 0.0
      %380 = vmatprep.subr.mxu0 0.0
      %381 = vmatpush1.msra.mxu0 0.0
      %382 = vmatprep.subr.mxu0 0.0
      %383 = vmatpush1.msra.mxu0 0.0
      %384 = vmatprep.subr.mxu0 0.0
      %385 = vmatpush1.msra.mxu0 0.0
      %386 = vmatprep.subr.mxu0 0.0
      %387 = vmatpush1.msra.mxu0 0.0
      %388 = vmatprep.mubr.f32.mxu0 0.0
      %389 = vmatmul.mubr.f32.gmra.mrb[0].mxu0 %v293
      %v390 = vpop.f32.mrb[0].mxu0
      %v391 = vadd.f32 0.0, %v390
      %v392 = vpop.f32.mrb[0].mxu0
      %v393 = vadd.f32 0.0, %v392
      %394 = vmatprep.mubr.f32.mxu0 0.0
      %395 = vmatmul.mubr.f32.gmra.mrb[0].mxu0 %v296
      %v396 = vpop.f32.mrb[0].mxu0
      %v397 = vadd.f32 0.0, %v396
      %v398 = vpop.f32.mrb[0].mxu0
      %v399 = vadd.f32 0.0, %v398
      %400 = vmatprep.mubr.f32.mxu0 0.0
      %401 = vmatmul.mubr.f32.gmra.mrb[0].mxu0 %v299
      %v402 = vpop.f32.mrb[0].mxu0
      %v403 = vadd.f32 0.0, %v402
      %v404 = vpop.f32.mrb[0].mxu0
      %v405 = vadd.f32 0.0, %v404
      %406 = vmatprep.mubr.f32.mxu0 0.0
      %407 = vmatmul.mubr.f32.gmra.mrb[0].mxu0 %v302
      %v408 = vpop.f32.mrb[0].mxu0
      %v409 = vadd.f32 0.0, %v408
      %v410 = vpop.f32.mrb[0].mxu0
      %v411 = vadd.f32 0.0, %v410
      %412 = vmatprep.mubr.f32.mxu0 0.0
      %413 = vmatmul.mubr.f32.gmra.mrb[0].mxu0 %v305
      %v414 = vpop.f32.mrb[0].mxu0
      %v415 = vadd.f32 0.0, %v414
      %v416 = vpop.f32.mrb[0].mxu0
      %v417 = vadd.f32 0.0, %v416
      %418 = vmatprep.mubr.f32.mxu0 0.0
      %419 = vmatmul.mubr.f32.gmra.mrb[0].mxu0 %v308
      %v420 = vpop.f32.mrb[0].mxu0
      %v421 = vadd.f32 0.0, %v420
      %v422 = vpop.f32.mrb[0].mxu0
      %v423 = vadd.f32 0.0, %v422
      %424 = vmatprep.mubr.f32.mxu0 0.0
      %425 = vmatmul.mubr.f32.gmra.mrb[0].mxu0 %v311
      %v426 = vpop.f32.mrb[0].mxu0
      %v427 = vadd.f32 0.0, %v426
      %v428 = vpop.f32.mrb[0].mxu0
      %v429 = vadd.f32 0.0, %v428
      %430 = vmatprep.mubr.f32.mxu0 0.0
      %431 = vmatmul.mubr.f32.gmra.mrb[0].mxu0 %v314
      %v432 = vpop.f32.mrb[0].mxu0
      %v433 = vadd.f32 0.0, %v432
      %v434 = vpop.f32.mrb[0].mxu0
      %v435 = vadd.f32 0.0, %v434
      %436 = vmatprep.mubr.f32.mxu0 0.0
      %437 = vmatmul.mubr.f32.gmra.mrb[0].mxu0 %v317
      %v438 = vpop.f32.mrb[0].mxu0
      %v439 = vadd.f32 0.0, %v438
      %v440 = vpop.f32.mrb[0].mxu0
      %v441 = vadd.f32 0.0, %v440
      %442 = vdwg.mxu0
      %443 = vrot.lane.b32.xlu0 %v391, 1
      %v444 = vpop.permute.xlu0 %443
      %445 = vrot.lane.b32.xlu0 %v393, 1
      %v446 = vpop.permute.xlu0 %445
      %v447 = vlaneseq
      %v448 = vand.u32 %v447, 127
      %vm449 = vcmp.lt.s32.totalorder %v448, 1
      %v450 = vsel %vm449, %v444, %v446
      %v451 = vsel %vm449, %v446, %v444
      %v452 = vmul.f32 %v451, %v240
      %v453 = vmul.f32 %v450, %v244
      %454 = vrot.lane.b32.xlu0 %v403, 127
      %v455 = vpop.permute.xlu0 %454
      %456 = vrot.lane.b32.xlu0 %v405, 127
      %v457 = vpop.permute.xlu0 %456
      %vm458 = vcmp.lt.s32.totalorder %v448, 127
      %v459 = vsel %vm458, %v455, %v457
      %v460 = vsel %vm458, %v457, %v455
      %v461 = vmul.f32 %v459, %v253
      %v462 = vmul.f32 %v460, %v257
      %v463 = vadd.f32 %v397, %v452
      %v464 = vadd.f32 %v399, %v453
      %v465 = vadd.f32 %v463, %v461
      %v466 = vadd.f32 %v464, %v462
      %467 = vrot.lane.b32.xlu0 %v409, 1
      %v468 = vpop.permute.xlu0 %467
      %469 = vrot.lane.b32.xlu0 %v411, 1
      %v470 = vpop.permute.xlu0 %469
      %v471 = vsel %vm449, %v468, %v470
      %v472 = vsel %vm449, %v470, %v468
      %v473 = vmul.f32 %v472, %v240
      %v474 = vmul.f32 %v471, %v244
      %475 = vrot.lane.b32.xlu0 %v421, 127
      %v476 = vpop.permute.xlu0 %475
      %477 = vrot.lane.b32.xlu0 %v423, 127
      %v478 = vpop.permute.xlu0 %477
      %v479 = vsel %vm458, %v476, %v478
      %v480 = vsel %vm458, %v478, %v476
      %v481 = vmul.f32 %v479, %v253
      %v482 = vmul.f32 %v480, %v257
      %v483 = vadd.f32 %v415, %v473
      %v484 = vadd.f32 %v417, %v474
      %v485 = vadd.f32 %v483, %v481
      %v486 = vadd.f32 %v484, %v482
      %487 = vrot.lane.b32.xlu0 %v427, 1
      %v488 = vpop.permute.xlu0 %487
      %489 = vrot.lane.b32.xlu0 %v429, 1
      %v490 = vpop.permute.xlu0 %489
      %v491 = vsel %vm449, %v488, %v490
      %v492 = vsel %vm449, %v490, %v488
      %v493 = vmul.f32 %v492, %v240
      %v494 = vmul.f32 %v491, %v244
      %495 = vrot.lane.b32.xlu0 %v439, 127
      %v496 = vpop.permute.xlu0 %495
      %497 = vrot.lane.b32.xlu0 %v441, 127
      %v498 = vpop.permute.xlu0 %497
      %v499 = vsel %vm458, %v496, %v498
      %v500 = vsel %vm458, %v498, %v496
      %v501 = vmul.f32 %v499, %v253
      %v502 = vmul.f32 %v500, %v257
      %v503 = vadd.f32 %v433, %v493
      %v504 = vadd.f32 %v435, %v494
      %v505 = vadd.f32 %v503, %v501
      %v506 = vadd.f32 %v504, %v502
      %507 = vrot.lane.b32.xlu0 %v465, 16
      %v508 = vpop.permute.xlu0 %507
      %509 = vrot.lane.b32.xlu0 %v466, 16
      %v510 = vpop.permute.xlu0 %509
      %vm511 = vcmp.lt.s32.totalorder %v448, 16
      %v512 = vsel %vm511, %v508, %v510
      %v513 = vsel %vm511, %v510, %v508
      %v514 = vmul.f32 %v513, %v266
      %v515 = vmul.f32 %v512, %v270
      %516 = vrot.lane.b32.xlu0 %v505, 112
      %v517 = vpop.permute.xlu0 %516
      %518 = vrot.lane.b32.xlu0 %v506, 112
      %v519 = vpop.permute.xlu0 %518
      %vm520 = vcmp.lt.s32.totalorder %v448, 112
      %v521 = vsel %vm520, %v517, %v519
      %v522 = vsel %vm520, %v519, %v517
      %v523 = vmul.f32 %v521, %v279
      %v524 = vmul.f32 %v522, %v283
      %v525 = vadd.f32 %v485, %v514
      %v526 = vadd.f32 %v486, %v515
      %v527 = vadd.f32 %v525, %v523
      %v528 = vadd.f32 %v526, %v524
      %530 = vset.pattern.permute.xlu0 0
      %531 = vperm.xlu0 %530, %v286
      %v532 = vpop.permute.xlu0 %531
      %v534 = vadd.f32 %v527, %v532
      %v535 = vadd.f32 %v528, %v532
      %vm536 = vcmp.gt.f32.partialorder %v534, 0.0
      %vm537 = vcmp.gt.f32.partialorder %v535, 0.0
      %v538 = vstv %s287
      %v539 = vmul.f32 %v538, %v534
      %v540 = vmul.f32 %v538, %v535
      %v541 = vsel %vm536, %v534, %v539
      %v542 = vsel %vm537, %v535, %v540
      %543 = vst [vmem:[%s225] sm:$0xff] %v541
      %544 = vst [vmem:[%s225 + $0x8] sm:$0xff] %v542
      %p545 = scmp.lt.s32.totalorder %s17, 1
      %s546 = scalar_select %p545, %s17, 1
      %s547 = smul.addr %s546, 2
      %s548 = smul.addr %s547, 8
      %s549 = scalar_lea.vmem %s5, %s548
      // Predicated region
      $region41: #{upsr_forward.3} parent=39 // pred_check
        %p550 = pneg %p145
      $region42: #{upsr_forward.3} parent=39 // pred_check_branch
        %552 = sbr.rel (%p550) target = $region44
      $region43: #{upsr_forward.3} parent=39 // pred_region
        _
      $region44: #{upsr_forward.3} parent=39 // pred_fallthru
        _
    $region40: #{upsr_forward.3} parent=5 // pred_fallthru
      _
    %p553 = scmp.le.s32.totalorder 2, %s12
    // Predicated region
    $region45: #{upsr_forward.3} parent=5 // pred_check
      %p554 = pneg %p553
    $region46: #{upsr_forward.3} parent=5 // pred_check_branch
      %556 = sbr.rel (%p554) target = $region48
    $region47: #{upsr_forward.3} parent=5 // pred_region
      %s557 = ssub.s32 %s12, 2
      // Predicated region
      $region49: #{upsr_forward.3} parent=47 // pred_check
        %p558 = pneg %p151
      $region50: #{upsr_forward.3} parent=47 // pred_check_branch
        %560 = sbr.rel (%p558) target = $region52
      $region51: #{upsr_forward.3} parent=47 // pred_region
        %p561 = scmp.lt.s32.totalorder %s18, 1
        %s562 = scalar_select %p561, %s18, 1
        %s563 = smul.addr %s562, 2
        %s564 = smul.addr %s563, 8
        %s565 = scalar_lea.vmem %s5, %s564
      $region52: #{upsr_forward.3} parent=47 // pred_fallthru
        _
    $region48: #{upsr_forward.3} parent=5 // pred_fallthru
      _
  $region6: #{upsr_forward.3} parent=0 // loop_footer
    %s16 = sadd.s32 1, %s12
  $region7: #{upsr_forward.3} parent=0 // loop_footer_branch
    %11 = sbr.rel target = $region3
  $region8: #{upsr_forward.3} parent=0 // loop_exit
    _

</llo_original>
